<compile_context>
chip_gen: v7x
topology: tpu7x:2x2x1
jax: 0.10.0
libtpu: 0.0.40
codegen_flags: <defaults>
</compile_context>

<pallas_src>
import functools

import jax
import jax.numpy as jnp
from jax.experimental import pallas as pl
from jax.experimental.pallas import tpu as pltpu

# ----------------------------------------------------------------------------
# Synthetic "metadata": list of variable sizes (1 = numerical/binary feature,
# k > 1 = categorical variable one-hot encoded over k columns).
# ----------------------------------------------------------------------------
VARIABLE_SIZES = [1, 1, 1, 5, 4, 4]          # 6 variables, 16 feature columns
NUM_FEATURES = sum(VARIABLE_SIZES)           # 16
NUM_VARIABLES = len(VARIABLE_SIZES)          # 6
DROP_PROBABILITY = 0.5


def _make_expand_matrix(variable_sizes, samples_per_row, v_slots):
    """E[s*v_slots + v, s*F + f] = 1 iff feature column f belongs to variable v.

    One [v_slots, F] block per sample packed into a 128-lane row; rows for the
    padded variable slots (v >= len(variable_sizes)) are zero.
    """
    import numpy as np
    feat = int(sum(variable_sizes))
    e = np.zeros((samples_per_row * v_slots, samples_per_row * feat),
                 dtype=np.float32)
    for s in range(samples_per_row):
        col = s * feat
        for v, size in enumerate(variable_sizes):
            e[s * v_slots + v, col:col + size] = 1.0
            col += size
    return jnp.asarray(e)


# ----------------------------------------------------------------------------
# Kernel: uniforms -> per-variable keep -> MXU expansion to per-feature mask ->
# elementwise masking of the lane-dense input tile.
# ----------------------------------------------------------------------------
def _multi_input_dropout_kernel(u_ref, x_ref, e_ref, o_ref, *, drop_p):
    # u_ref: [T, S*V_SLOTS] uniforms in [0,1)
    # e_ref: [S*V_SLOTS, S*F] 0/1 expansion matrix (VMEM-resident)
    # x_ref / o_ref: [T, S*F] lane-dense view of the batch (S*F == 128)
    keep = (u_ref[...] >= jnp.float32(drop_p)).astype(jnp.float32)        # [T, 64]
    mask = jnp.dot(keep, e_ref[...], preferred_element_type=jnp.float32)  # [T, 128]
    # multiply in the input dtype (bf16 stays bf16 on v6e/v7x VPUs)
    o_ref[...] = x_ref[...] * mask.astype(x_ref.dtype)


def _multi_input_dropout_from_uniforms(x, u, *, drop_probability,
                                       variable_sizes, tile_rows=4096):
    """x: [batch, F] floats.  u: [batch, v_slots] uniforms in [0,1)."""
    batch, feat = x.shape
    assert feat == sum(variable_sizes)
    # TODO(synk): generalize to feature counts that do not divide 128 (pad the
    # per-sample feature block); the synthetic metadata here gives F = 16.
    assert 128 % feat == 0, "lane-dense packing needs F | 128"
    samples_per_row = 128 // feat
    num_vars = len(variable_sizes)
    v_slots = u.shape[1]
    assert v_slots >= num_vars

    rows = pl.cdiv(batch, samples_per_row)
    if rows <= tile_rows:
        tile, rows_pad = rows, rows                   # grid == 1, block == array
    else:
        assert tile_rows % 8 == 0, "tile_rows must be a multiple of 8"
        tile = tile_rows
        rows_pad = pl.cdiv(rows, tile) * tile
    batch_pad = rows_pad * samples_per_row
    if batch_pad != batch:
        x = jnp.pad(x, ((0, batch_pad - batch), (0, 0)))
        u = jnp.pad(u, ((0, batch_pad - batch), (0, 0)))

    x_view = x.reshape(rows_pad, samples_per_row * feat)      # [R, 128] (free)
    u_view = u.reshape(rows_pad, samples_per_row * v_slots)   # [R, 64]  (free)
    expand = _make_expand_matrix(variable_sizes, samples_per_row, v_slots)

    kernel = functools.partial(_multi_input_dropout_kernel,
                               drop_p=float(drop_probability))

    extra = {}
    if jax.default_backend() == "tpu":
        # Megacore / dual-TensorCore sharding of the batch axis (v7x especially).
        # Only passed on real TPUs so the CPU fallback interpreter stays happy.
        extra["compiler_params"] = pltpu.CompilerParams(
            dimension_semantics=("parallel",))

    out = pl.pallas_call(
        kernel,
        out_shape=jax.ShapeDtypeStruct(x_view.shape, x.dtype),
        grid=(rows_pad // tile,),
        in_specs=[
            pl.BlockSpec((tile, samples_per_row * v_slots), lambda i: (i, 0)),
            pl.BlockSpec((tile, samples_per_row * feat), lambda i: (i, 0)),
            # expansion matrix: loop-invariant -> constant index_map, fetched
            # once and kept VMEM-resident across all grid steps.
            pl.BlockSpec((samples_per_row * v_slots, samples_per_row * feat),
                         lambda i: (0, 0)),
        ],
        out_specs=pl.BlockSpec((tile, samples_per_row * feat), lambda i: (i, 0)),
        **extra,
    )(u_view, x_view, expand)

    return out.reshape(batch_pad, feat)[:batch]


def multi_input_dropout(x, key, *, drop_probability=DROP_PROBABILITY,
                        variable_sizes=VARIABLE_SIZES, training=True,
                        tile_rows=4096):
    """x: [batch, num_features].  key: jax PRNG key (fresh per training step)."""
    if not training:
        return x  # eval mode: identity (matches the reference module)
    num_vars = len(variable_sizes)
    v_slots = 1 << max(0, (num_vars - 1).bit_length())   # next pow2 >= num_vars
    u = jax.random.uniform(key, (x.shape[0], v_slots), dtype=jnp.float32)
    return _multi_input_dropout_from_uniforms(
        x, u, drop_probability=drop_probability,
        variable_sizes=variable_sizes, tile_rows=tile_rows)


if __name__ == "__main__":
    import numpy as np

    key = jax.random.PRNGKey(0)
    k_data, k_drop, k_u = jax.random.split(key, 3)

    batch = 8
    x = jax.random.normal(k_data, (batch, NUM_FEATURES), dtype=jnp.float32)
    x = x + jnp.sign(x) * 0.5   # keep values away from zero -> unambiguous checks
    x_np = np.asarray(x)

    ok = True

    # 1) training mode through the public API: structural checks -- each feature
    #    is either exactly kept or exactly zeroed, consistently per variable.
    out = jax.block_until_ready(multi_input_dropout(x, k_drop, training=True))
    out_np = np.asarray(out)
    col = 0
    for size in VARIABLE_SIZES:
        blk_out = out_np[:, col:col + size]
        blk_in = x_np[:, col:col + size]
        kept = np.isclose(blk_out, blk_in)
        dropped = np.isclose(blk_out, 0.0)
        ok &= bool(np.all(kept | dropped))
        ok &= bool(np.all(np.all(kept, axis=1) | np.all(dropped, axis=1)))
        col += size

    # 2) exact check against a pure-numpy reference with shared uniforms, using
    #    a batch that is not a multiple of the packing / tile size so the
    #    grid (> 1 tile) + padding path is exercised.
    big_batch = 100
    xb = jax.random.normal(k_data, (big_batch, NUM_FEATURES), dtype=jnp.float32)
    ub = jax.random.uniform(k_u, (big_batch, 8), dtype=jnp.float32)
    out_big = jax.block_until_ready(_multi_input_dropout_from_uniforms(
        xb, ub, drop_probability=DROP_PROBABILITY,
        variable_sizes=VARIABLE_SIZES, tile_rows=8))
    keep_var = (np.asarray(ub)[:, :NUM_VARIABLES]
                >= DROP_PROBABILITY).astype(np.float32)
    keep_feat = np.repeat(keep_var, VARIABLE_SIZES, axis=1)
    expected = np.asarray(xb) * keep_feat
    ok &= bool(np.allclose(np.asarray(out_big), expected))

    # 3) eval mode is identity.
    out_eval = jax.block_until_ready(multi_input_dropout(x, k_drop, training=False))
    ok &= bool(np.allclose(np.asarray(out_eval), x_np))

    if ok:
        print("KERNEL_OK")
    else:
        raise SystemExit("kernel output failed sanity checks")
</pallas_src>

<mosaic_0001>
module attributes {stable_mosaic.version = 11 : i64} {
  func.func @_multi_input_dropout_kernel(%arg0: i32, %arg1: memref<1x64xf32, #tpu.memory_space<vmem>>, %arg2: memref<1x128xf32, #tpu.memory_space<vmem>>, %arg3: memref<64x128xf32, #tpu.memory_space<vmem>>, %arg4: memref<1x128xf32, #tpu.memory_space<vmem>>) attributes {dimension_semantics = [#tpu.dimension_semantics<arbitrary>], iteration_bounds = array<i64: 1>, scalar_prefetch = 0 : i64, scratch_operands = 0 : i64, tpu.core_type = #tpu.core_type<tc>, window_params = [{transform_indices = @transform_0, window_bounds = array<i64: 1, 64>}, {transform_indices = @transform_1, window_bounds = array<i64: 1, 128>}, {pipeline_mode = #tpu.pipeline_mode<synchronous>, transform_indices = @transform_2, window_bounds = array<i64: 64, 128>}, {transform_indices = @transform_3, window_bounds = array<i64: 1, 128>}]} {
    %c0 = arith.constant 0 : index
    %c0_0 = arith.constant 0 : index
    %0 = vector.load %arg1[%c0, %c0_0] : memref<1x64xf32, #tpu.memory_space<vmem>>, vector<1x64xf32>
    %cst = arith.constant 5.000000e-01 : f32
    %1 = vector.broadcast %cst : f32 to vector<1x64xf32>
    %2 = arith.cmpf oge, %0, %1 : vector<1x64xf32>
    %3 = arith.extui %2 : vector<1x64xi1> to vector<1x64xi32>
    %4 = arith.sitofp %3 : vector<1x64xi32> to vector<1x64xf32>
    %c0_1 = arith.constant 0 : index
    %c0_2 = arith.constant 0 : index
    %5 = vector.load %arg3[%c0_1, %c0_2] : memref<64x128xf32, #tpu.memory_space<vmem>>, vector<64x128xf32>
    %cst_3 = arith.constant dense<0.000000e+00> : vector<1x128xf32>
    %6 = tpu.matmul %4, %5, %cst_3 {dimension_numbers = #tpu.dot_dimension_numbers<[1], [0], [0], [1], [0, 0, 1, 1], [], []>} : vector<1x64xf32>, vector<64x128xf32>, vector<1x128xf32> -> vector<1x128xf32>
    %c0_4 = arith.constant 0 : index
    %c0_5 = arith.constant 0 : index
    %7 = vector.load %arg2[%c0_4, %c0_5] : memref<1x128xf32, #tpu.memory_space<vmem>>, vector<1x128xf32>
    %8 = arith.mulf %7, %6 : vector<1x128xf32>
    %c0_6 = arith.constant 0 : index
    %c0_7 = arith.constant 0 : index
    %9 = vector.load %arg4[%c0_6, %c0_7] : memref<1x128xf32, #tpu.memory_space<vmem>>, vector<1x128xf32>
    tpu.vector_store %arg4[%c0_6, %c0_7], %8 {strides = array<i32>} : memref<1x128xf32, #tpu.memory_space<vmem>>, vector<1x128xf32>,
    return
  }
  func.func @transform_0(%arg0: i32) -> (i32, i32) {
    %c0_i32 = arith.constant 0 : i32
    %c0_i32_0 = arith.constant 0 : i32
    return %arg0, %c0_i32 : i32, i32
  }
  func.func @transform_1(%arg0: i32) -> (i32, i32) {
    %c0_i32 = arith.constant 0 : i32
    %c0_i32_0 = arith.constant 0 : i32
    return %arg0, %c0_i32 : i32, i32
  }
  func.func @transform_2(%arg0: i32) -> (i32, i32) {
    %c0_i32 = arith.constant 0 : i32
    %c0_i32_0 = arith.constant 0 : i32
    %c0_i32_1 = arith.constant 0 : i32
    return %c0_i32, %c0_i32_0 : i32, i32
  }
  func.func @transform_3(%arg0: i32) -> (i32, i32) {
    %c0_i32 = arith.constant 0 : i32
    %c0_i32_0 = arith.constant 0 : i32
    return %arg0, %c0_i32 : i32, i32
  }
}

</mosaic_0001>

<llo_original>
// kernel: tpu_custom_call.1
$region0: #{tpu_custom_call.1}
  #allocation0 [shape = 'u32[]', space=smem, size = 0x4, offset = 0x4, fixed_abs, tag = 'smem constant byte address 0x4 - core index']
  #allocation1 [shape = 'u32[144,128]{1,0:T(1,128)}', space=vmem, size = 0x12000, scoped, tag = 'internal scratch']
  %s0 = inlined_call_operand.hbm [shape: f32[1,64], index: 0, kind: input, shape index: {}]
  %s1 = inlined_call_operand.vmem [shape: f32[1,128], index: 1, kind: input, shape index: {}]
  %s2 = inlined_call_operand.hbm [shape: f32[64,128], index: 2, kind: input, shape index: {}]
  %s3 = inlined_call_operand.hbm [shape: f32[1,128], index: 3, kind: output, shape index: {}]
  %s4 = sld [smem:[#allocation0]]
  $region30: #{tpu_custom_call.1} parent=0
    _
  %s6 = ssub.s32 1, %s4
  %s7 = scalar_select 0, %s6, %s4
  $region1: #{tpu_custom_call.1} parent=0
    #allocation2 [shape = 'u8[512]{0}', space=vmem, size = 0x400, scoped, tag = 'input window, operand 0, single buffered']
    #allocation3 [shape = 's32[1]{0}', space=sflag, size = 0x4, scoped, tag = 'scoped memory for tpu_custom_call.1']
    #allocation4 [shape = 's32[1]{0}', space=sflag, size = 0x4, scoped, tag = 'scoped memory for tpu_custom_call.1']
    #allocation5 [shape = 'u8[32768]{0}', space=vmem, size = 0x8000, scoped, tag = 'input window, operand 2, single buffered']
    #allocation6 [shape = 's32[1]{0}', space=sflag, size = 0x4, scoped, tag = 'scoped memory for tpu_custom_call.1']
    #allocation7 [shape = 'u8[512]{0}', space=vmem, size = 0x400, scoped, tag = 'output window, operand 0, single buffered']
    %8 = vsyncpa [#allocation3], 0
    %9 = vsyncpa [#allocation6], 0
    %10 = vsyncpa [#allocation4], 0
    // Predicated region
    $region2: #{tpu_custom_call.1} parent=1 // pred_check
      _
    $region3: #{tpu_custom_call.1} parent=1 // pred_check_branch
      %12 = sbr.rel (0) target = $region5
    $region4: #{tpu_custom_call.1} parent=1 // pred_region
      %s14 = ssub.s32 16, 16
      %15 = vsyncadd [#allocation3], %s14
      %s17 = sshll.u32 [#allocation2], 4
      %s18 = int_to_ptr.vmem [resolvable:$true] %s17
      %20 = dma.hbm_to_vmem [thread:$0]  %s0, 16, %s18, [#allocation3]
    $region5: #{tpu_custom_call.1} parent=1 // pred_fallthru
      _
    // Predicated region
    $region6: #{tpu_custom_call.1} parent=1 // pred_check
      _
    $region7: #{tpu_custom_call.1} parent=1 // pred_check_branch
      %22 = sbr.rel (0) target = $region9
    $region8: #{tpu_custom_call.1} parent=1 // pred_region
      _
    $region9: #{tpu_custom_call.1} parent=1 // pred_fallthru
      _
    // Predicated region
    $region10: #{tpu_custom_call.1} parent=1 // pred_check
      _
    $region11: #{tpu_custom_call.1} parent=1 // pred_check_branch
      %24 = sbr.rel (0) target = $region13
    $region12: #{tpu_custom_call.1} parent=1 // pred_region
      %s26 = ssub.s32 1024, 1024
      %27 = vsyncadd [#allocation6], %s26
      %s28 = sshll.u32 [#allocation5], 4
      %s29 = int_to_ptr.vmem [resolvable:$true] %s28
      %34 = dma.hbm_to_vmem [thread:$0]  %s2, 1024, %s29, [#allocation6], 128, 128, 8
    $region13: #{tpu_custom_call.1} parent=1 // pred_fallthru
      _
    // Predicated region
    $region14: #{tpu_custom_call.1} parent=1 // pred_check
      _
    $region15: #{tpu_custom_call.1} parent=1 // pred_check_branch
      %36 = sbr.rel (0) target = $region17
    $region16: #{tpu_custom_call.1} parent=1 // pred_region
      %37 = dma.done [#allocation3], 16
    $region17: #{tpu_custom_call.1} parent=1 // pred_fallthru
      _
    // Predicated region
    $region18: #{tpu_custom_call.1} parent=1 // pred_check
      _
    $region19: #{tpu_custom_call.1} parent=1 // pred_check_branch
      %39 = sbr.rel (0) target = $region21
    $region20: #{tpu_custom_call.1} parent=1 // pred_region
      %40 = dma.done [#allocation6], 1024
    $region21: #{tpu_custom_call.1} parent=1 // pred_fallthru
      _
    %v41 = vld [vmem:[#allocation2] sm:$0x1]
    %vm42 = vcmp.ge.f32.partialorder %v41, 0.5
    %v43 = vsel %vm42, 1, 0
    %v44 = vcvt.s32.f32 %v43
    %v45 = vld [vmem:[#allocation5] sm:$0xff]
    %v46 = vld [vmem:[#allocation5 + $0x8] sm:$0xff]
    %v47 = vld [vmem:[#allocation5 + $0x10] sm:$0xff]
    %v48 = vld [vmem:[#allocation5 + $0x18] sm:$0xff]
    %v49 = vld [vmem:[#allocation5 + $0x20] sm:$0xff]
    %v50 = vld [vmem:[#allocation5 + $0x28] sm:$0xff]
    %v51 = vld [vmem:[#allocation5 + $0x30] sm:$0xff]
    %v52 = vld [vmem:[#allocation5 + $0x38] sm:$0xff]
    %vm53 = vcmask 523264
    %v55 = vsel %vm53, %v44, 0
    %57 = vmatprep.subr.mxu0 0.0
    %58 = vmatpush1.msra.mxu0 %v45
    %59 = vmatprep.subr.mxu0 0.0
    %60 = vmatpush1.msra.mxu0 %v46
    %61 = vmatprep.subr.mxu0 0.0
    %62 = vmatpush1.msra.mxu0 %v47
    %63 = vmatprep.subr.mxu0 0.0
    %64 = vmatpush1.msra.mxu0 %v48
    %65 = vmatprep.subr.mxu0 0.0
    %66 = vmatpush1.msra.mxu0 %v49
    %67 = vmatprep.subr.mxu0 0.0
    %68 = vmatpush1.msra.mxu0 %v50
    %69 = vmatprep.subr.mxu0 0.0
    %70 = vmatpush1.msra.mxu0 %v51
    %71 = vmatprep.subr.mxu0 0.0
    %72 = vmatpush1.msra.mxu0 %v52
    %73 = vmatprep.subr.mxu0 0.0
    %74 = vmatpush1.msra.mxu0 0.0
    %75 = vmatprep.subr.mxu0 0.0
    %76 = vmatpush1.msra.mxu0 0.0
    %77 = vmatprep.subr.mxu0 0.0
    %78 = vmatpush1.msra.mxu0 0.0
    %79 = vmatprep.subr.mxu0 0.0
    %80 = vmatpush1.msra.mxu0 0.0
    %81 = vmatprep.subr.mxu0 0.0
    %82 = vmatpush1.msra.mxu0 0.0
    %83 = vmatprep.subr.mxu0 0.0
    %84 = vmatpush1.msra.mxu0 0.0
    %85 = vmatprep.subr.mxu0 0.0
    %86 = vmatpush1.msra.mxu0 0.0
    %87 = vmatprep.subr.mxu0 0.0
    %88 = vmatpush1.msra.mxu0 0.0
    %89 = vmatprep.subr.mxu0 0.0
    %90 = vmatpush1.msra.mxu0 0.0
    %91 = vmatprep.subr.mxu0 0.0
    %92 = vmatpush1.msra.mxu0 0.0
    %93 = vmatprep.subr.mxu0 0.0
    %94 = vmatpush1.msra.mxu0 0.0
    %95 = vmatprep.subr.mxu0 0.0
    %96 = vmatpush1.msra.mxu0 0.0
    %97 = vmatprep.subr.mxu0 0.0
    %98 = vmatpush1.msra.mxu0 0.0
    %99 = vmatprep.subr.mxu0 0.0
    %100 = vmatpush1.msra.mxu0 0.0
    %101 = vmatprep.subr.mxu0 0.0
    %102 = vmatpush1.msra.mxu0 0.0
    %103 = vmatprep.subr.mxu0 0.0
    %104 = vmatpush1.msra.mxu0 0.0
    %105 = vmatprep.subr.mxu0 0.0
    %106 = vmatpush1.msra.mxu0 0.0
    %107 = vmatprep.subr.mxu0 0.0
    %108 = vmatpush1.msra.mxu0 0.0
    %109 = vmatprep.subr.mxu0 0.0
    %110 = vmatpush1.msra.mxu0 0.0
    %111 = vmatprep.subr.mxu0 0.0
    %112 = vmatpush1.msra.mxu0 0.0
    %113 = vmatprep.subr.mxu0 0.0
    %114 = vmatpush1.msra.mxu0 0.0
    %115 = vmatprep.subr.mxu0 0.0
    %116 = vmatpush1.msra.mxu0 0.0
    %117 = vmatprep.subr.mxu0 0.0
    %118 = vmatpush1.msra.mxu0 0.0
    %119 = vmatprep.subr.mxu0 0.0
    %120 = vmatpush1.msra.mxu0 0.0
    %121 = vmatprep.mubr.f32.mxu0 0.0
    %122 = vmatmul.mubr.f32.gmra.mrb[0].mxu0 %v55
    %v123 = vpop.f32.mrb[0].mxu0
    %v124 = vadd.f32 0.0, %v123
    %v125 = vpop.f32.mrb[0].mxu0
    %126 = vdwg.mxu0
    %v127 = vld [vmem:[%s1] sm:$0x1]
    %v128 = vmul.f32 %v127, %v124
    %129 = vst [vmem:[#allocation7] sm:$0x1] %v128
    // Predicated region
    $region22: #{tpu_custom_call.1} parent=1 // pred_check
      _
    $region23: #{tpu_custom_call.1} parent=1 // pred_check_branch
      %131 = sbr.rel (0) target = $region25
    $region24: #{tpu_custom_call.1} parent=1 // pred_region
      %s133 = ssub.s32 16, 16
      %134 = vsyncadd [#allocation4], %s133
      %s136 = sshll.u32 [#allocation7], 4
      %s137 = int_to_ptr.vmem [resolvable:$true] %s136
      %139 = dma.vmem_to_hbm [thread:$0]  %s137, 16, %s3, [#allocation4]
    $region25: #{tpu_custom_call.1} parent=1 // pred_fallthru
      _
    // Predicated region
    $region26: #{tpu_custom_call.1} parent=1 // pred_check
      _
    $region27: #{tpu_custom_call.1} parent=1 // pred_check_branch
      %141 = sbr.rel (0) target = $region29
    $region28: #{tpu_custom_call.1} parent=1 // pred_region
      %142 = dma.done [#allocation4], 16
    $region29: #{tpu_custom_call.1} parent=1 // pred_fallthru
      _
    %143 = vsyncpa [#allocation3], 1
    %144 = vsyncpa [#allocation6], 1
    %145 = vsyncpa [#allocation4], 1

</llo_original>
